<compile_context>
chip_gen: v7x
topology: tpu7x:2x2x1
jax: 0.10.0
libtpu: 0.0.40
codegen_flags: <defaults>
</compile_context>

<pallas_src>
import functools

import jax
import jax.numpy as jnp
from jax.experimental import pallas as pl
from jax.experimental.pallas import tpu as pltpu


def _round_up(x, m):
    return ((x + m - 1) // m) * m


def _pick_block_rows(m, cap=256):
    """MXU-friendly anchor-row tile: `cap` when M is large (M is then padded up
    to a multiple of it), else the whole 8-rounded extent."""
    return cap if m >= cap else _round_up(m, 8)


def _pick_block_cols(n, cap=512):
    """Contrast column chunk: full extent when small, else the largest multiple
    of 128 <= cap that divides N (keeps the running row-max exact, no column
    masking needed)."""
    if n <= cap:
        return n
    t = (cap // 128) * 128
    while t >= 128:
        if n % t == 0:
            return t
        t -= 128
    # TODO(synk): pad N and mask padded columns out of the running row max for
    # N not divisible by 128 (rare for contrastive batches).
    return n


def _local_con_loss_kernel(anchor_ref, contrast_ref, idr_ref, idc_ref,
                           out_ref, m_sc, d_sc, t_sc, c_sc,
                           *, inv_temp, rows_valid):
    """One (anchor-row tile, contrast-column chunk) step of the local SupCon loss.

    anchor_ref   : (TM, Dp)  anchor rows (re-fetched only when the row tile changes)
    contrast_ref : (TN, Dp)  streamed contrast column chunk
    idr_ref      : (TM, 1)   int32 sample/class id per anchor row
    idc_ref      : (1, TN)   int32 sample/class id per contrast row
    out_ref      : (TM, 1)   written on the last column chunk:
                             sum_j mask[i, j] * log_prob[i, j]
    m/d/t/c_sc   : (TM, 1)   f32 scratch — running row max (over ALL columns),
                             sum_pos exp(s - m), sum_pos s, positive count.
    """
    i = pl.program_id(0)
    k = pl.program_id(1)
    tm = anchor_ref.shape[0]
    tn = contrast_ref.shape[0]

    @pl.when(k == 0)
    def _():
        m_sc[...] = jnp.full_like(m_sc, -jnp.inf)
        d_sc[...] = jnp.zeros_like(d_sc)
        t_sc[...] = jnp.zeros_like(t_sc)
        c_sc[...] = jnp.zeros_like(c_sc)

    # Fold 1/temperature into the (TM, Dp) anchor tile (N/D x fewer VPU ops than
    # scaling the (TM, TN) logits).  MXU runs in the input dtype (bf16-friendly)
    # and accumulates in f32.  Contract the feature axes directly — same pattern
    # as flash attention's q @ k.T, no per-step transpose of the streamed chunk.
    a = anchor_ref[...] * inv_temp
    s = jax.lax.dot_general(
        a, contrast_ref[...],
        dimension_numbers=(((1,), (1,)), ((), ())),
        preferred_element_type=jnp.float32)                          # (TM, TN)

    # Positive-pair mask from per-row ids; self-pairs excluded (logits_mask);
    # anchor rows padded past the true M excluded entirely.
    same = idr_ref[...] == idc_ref[...]                              # (TM, TN)
    row = i * tm + jax.lax.broadcasted_iota(jnp.int32, (tm, tn), 0)
    col = k * tn + jax.lax.broadcasted_iota(jnp.int32, (tm, tn), 1)
    pos = jnp.logical_and(same, row != col)
    if rows_valid is not None:
        pos = jnp.logical_and(pos, row < rows_valid)

    # Online, positives-only log-sum-exp.  The running max is over ALL columns
    # (as in the reference); reductions are where-masked on the boolean mask.
    m_prev = m_sc[...]
    m_new = jnp.maximum(m_prev, jnp.max(s, axis=1, keepdims=True))
    p = jnp.where(pos, jnp.exp(s - m_new), 0.0)
    d_sc[...] = d_sc[...] * jnp.exp(m_prev - m_new) + jnp.sum(p, axis=1, keepdims=True)
    t_sc[...] = t_sc[...] + jnp.sum(jnp.where(pos, s, 0.0), axis=1, keepdims=True)
    c_sc[...] = c_sc[...] + jnp.sum(jnp.where(pos, 1.0, 0.0), axis=1, keepdims=True)
    m_sc[...] = m_new

    @pl.when(k == pl.num_programs(1) - 1)
    def _():
        # sum_j pos*(s - m - log d) = sum_pos s - cnt * (m + log d).
        # Rows with zero positives (padded rows, degenerate label sets) are
        # guarded to 0 (the PyTorch reference NaNs there).
        cnt = c_sc[...]
        lse = m_sc[...] + jnp.log(d_sc[...])
        out_ref[...] = jnp.where(cnt > 0.0, t_sc[...] - cnt * lse, 0.0)


def local_con_loss(features, labels=None, mask=None, *, temperature=0.07,
                   contrast_mode="all", compute_dtype=jnp.bfloat16,
                   block_rows=None, block_cols=None):
    """Pallas-TPU forward of LocalConLoss.

    features: (bsz, n_views, ...) float array (trailing dims are flattened).
    labels:   optional (bsz,) integer array.  None -> SimCLR eye mask.
    compute_dtype: dtype fed to the MXU (bf16 by default; accumulation is f32).
                   Pass jnp.float32 (or None) to keep the input precision.
    """
    if features.ndim < 3:
        raise ValueError("`features` needs to be [bsz, n_views, ...], "
                         "at least 3 dimensions are required")
    if labels is not None and mask is not None:
        raise ValueError("Cannot define both `labels` and `mask`")
    if mask is not None:
        # TODO(synk): an explicit (possibly asymmetric) user-provided mask is
        # not supported by this id-based Pallas path (needs an extra streamed
        # (TM, TN) mask input).
        raise NotImplementedError("explicit `mask` is not supported")

    feats = features.reshape(features.shape[0], features.shape[1], -1)
    if compute_dtype is not None:
        feats = feats.astype(compute_dtype)
    B, V, D = feats.shape
    N = V * B

    # contrast_feature = cat(unbind(features, dim=1), dim=0): row v*B + b.
    contrast = jnp.transpose(feats, (1, 0, 2)).reshape(N, D)

    # Per-row "id" that encodes the positive mask:
    #   labels is None -> eye(B) mask        -> id = sample index
    #   labels given   -> labels == labels.T -> id = label
    if labels is None:
        base_ids = jnp.arange(B, dtype=jnp.int32)
    else:
        base_ids = jnp.asarray(labels).reshape(-1).astype(jnp.int32)
        if base_ids.shape[0] != B:
            raise ValueError("Num of labels does not match num of features")
    ids = jnp.tile(base_ids, V)                                  # (N,)

    # Zero-pad the feature (lane) axis to a multiple of 128 (dot products are
    # unchanged).
    D_p = _round_up(D, 128)
    if D_p != D:
        contrast = jnp.pad(contrast, ((0, 0), (0, D_p - D)))

    if contrast_mode == "one":
        anchor, anchor_ids = contrast[:B], ids[:B]
    elif contrast_mode == "all":
        anchor, anchor_ids = contrast, ids                       # same HBM array
    else:
        raise ValueError(f"Unknown mode: {contrast_mode}")
    M = anchor.shape[0]

    TM = block_rows if block_rows is not None else _pick_block_rows(M)
    TN = block_cols if block_cols is not None else _pick_block_cols(N)
    assert TM == M or TM % 8 == 0, (TM, M)
    assert N % TN == 0, (TN, N)

    # Pad anchor rows up to a multiple of TM; padded rows are masked out
    # in-kernel by their global row index and contribute exactly 0.
    M_p = _round_up(M, TM)
    if M_p != M:
        anchor = jnp.pad(anchor, ((0, M_p - M), (0, 0)))
        anchor_ids = jnp.pad(anchor_ids, (0, M_p - M))
    rows_valid = M if M_p != M else None

    idr = anchor_ids.reshape(M_p, 1)
    idc = ids.reshape(1, N)
    grid = (M_p // TM, N // TN)

    kernel = functools.partial(_local_con_loss_kernel,
                               inv_temp=1.0 / float(temperature),
                               rows_valid=rows_valid)

    itemsize = jnp.dtype(anchor.dtype).itemsize
    vmem_est = (2 * (TM + TN) * D_p * itemsize   # double-buffered anchor + contrast tiles
                + 6 * TM * TN * 4                # (TM, TN) f32 intermediates
                + 16 * TM * 4 + 4 * TN * 4       # scratch accumulators, ids, out
                + (2 << 20))                     # headroom
    vmem_limit = int(min(64 * 1024 * 1024, max(32 * 1024 * 1024, 2 * vmem_est)))

    row_sums = pl.pallas_call(
        kernel,
        out_shape=jax.ShapeDtypeStruct((M_p, 1), jnp.float32),
        grid=grid,
        in_specs=[
            pl.BlockSpec((TM, D_p), lambda i, k: (i, 0)),   # anchor row tile
            pl.BlockSpec((TN, D_p), lambda i, k: (k, 0)),   # contrast column chunk
            pl.BlockSpec((TM, 1), lambda i, k: (i, 0)),     # anchor ids
            pl.BlockSpec((1, TN), lambda i, k: (0, k)),     # contrast ids
        ],
        out_specs=pl.BlockSpec((TM, 1), lambda i, k: (i, 0)),
        scratch_shapes=[pltpu.VMEM((TM, 1), jnp.float32)] * 4,
        compiler_params=pltpu.CompilerParams(
            dimension_semantics=("parallel", "arbitrary"),
            vmem_limit_bytes=vmem_limit,
        ),
    )(anchor, contrast, idr, idc)

    # loss = -mean over the full (M, N) mask * log_prob matrix (matches the
    # PyTorch module's `(mask * log_prob).mean()` "local" semantics).
    return -jnp.sum(row_sums) / jnp.float32(M * N)


def _local_con_loss_ref(features, labels=None, temperature=0.07,
                        contrast_mode="all"):
    """Pure-JAX transliteration of the PyTorch forward (reference)."""
    feats = features.reshape(features.shape[0], features.shape[1], -1)
    feats = feats.astype(jnp.float32)
    B, V, _ = feats.shape
    if labels is None:
        mask = jnp.eye(B, dtype=jnp.float32)
    else:
        lab = jnp.asarray(labels).reshape(-1, 1)
        mask = (lab == lab.T).astype(jnp.float32)
    contrast = jnp.concatenate([feats[:, v] for v in range(V)], axis=0)  # (V*B, D)
    if contrast_mode == "one":
        anchor, anchor_count = feats[:, 0], 1
    else:
        anchor, anchor_count = contrast, V
    adc = jax.lax.dot_general(
        anchor, contrast, dimension_numbers=(((1,), (1,)), ((), ())),
        precision=jax.lax.Precision.HIGHEST,
        preferred_element_type=jnp.float32) / temperature
    logits = adc - jnp.max(adc, axis=1, keepdims=True)
    mask = jnp.tile(mask, (anchor_count, V))                             # (M, N)
    M, N = mask.shape
    logits_mask = (jnp.arange(M)[:, None] != jnp.arange(N)[None, :]).astype(jnp.float32)
    mask = mask * logits_mask
    exp_logits = jnp.exp(logits) * logits_mask
    log_prob = logits - jnp.log(jnp.sum(mask * exp_logits, axis=1, keepdims=True))
    return -jnp.mean(mask * log_prob)


if __name__ == "__main__":
    key = jax.random.PRNGKey(0)
    k1, k2, k3 = jax.random.split(key, 3)

    # --- 1) small supervised case, default bf16 compute path ---
    B, V, D = 16, 2, 32
    feats = jax.random.normal(k1, (B, V, D), dtype=jnp.float32)
    feats = feats / jnp.sqrt(jnp.sum(feats * feats, axis=-1, keepdims=True))
    labels = jnp.arange(B, dtype=jnp.int32) % 4            # 4 classes x 4 samples

    loss = local_con_loss(feats, labels, temperature=0.07)
    jax.block_until_ready(loss)
    ref = _local_con_loss_ref(feats, labels, temperature=0.07)
    assert jnp.allclose(loss, ref, rtol=5e-2, atol=5e-2), (loss, ref)

    # --- 2) unsupervised SimCLR-degenerate path (labels=None), f32 compute ---
    loss_u = local_con_loss(feats, None, temperature=0.07,
                            compute_dtype=jnp.float32)
    jax.block_until_ready(loss_u)
    ref_u = _local_con_loss_ref(feats, None, temperature=0.07)
    assert jnp.allclose(loss_u, ref_u, rtol=5e-2, atol=5e-2), (loss_u, ref_u)

    # --- 3) larger case forcing a (4, 2) grid: exercises the online-LSE
    #         accumulation across contrast column chunks ---
    B2, V2, D2 = 128, 2, 32
    feats2 = jax.random.normal(k2, (B2, V2, D2), dtype=jnp.float32)
    feats2 = feats2 / jnp.sqrt(jnp.sum(feats2 * feats2, axis=-1, keepdims=True))
    labels2 = jnp.arange(B2, dtype=jnp.int32) % 8
    loss2 = local_con_loss(feats2, labels2, temperature=0.07,
                           block_rows=64, block_cols=128)
    jax.block_until_ready(loss2)
    ref2 = _local_con_loss_ref(feats2, labels2, temperature=0.07)
    assert jnp.allclose(loss2, ref2, rtol=5e-2, atol=5e-2), (loss2, ref2)

    # --- 4) M not a multiple of the 256-row tile: exercises anchor-row padding
    #         + the in-kernel row-validity / zero-positive guard ---
    B3, V3, D3 = 160, 2, 32
    feats3 = jax.random.normal(k3, (B3, V3, D3), dtype=jnp.float32)
    feats3 = feats3 / jnp.sqrt(jnp.sum(feats3 * feats3, axis=-1, keepdims=True))
    labels3 = jnp.arange(B3, dtype=jnp.int32) % 4
    loss3 = local_con_loss(feats3, labels3, temperature=0.07)
    jax.block_until_ready(loss3)
    ref3 = _local_con_loss_ref(feats3, labels3, temperature=0.07)
    assert jnp.allclose(loss3, ref3, rtol=5e-2, atol=5e-2), (loss3, ref3)

    print("KERNEL_OK")
</pallas_src>

<mosaic_0001>
module attributes {stable_mosaic.version = 11 : i64} {
  func.func @_local_con_loss_kernel(%arg0: i32, %arg1: i32, %arg2: memref<32x128xbf16, #tpu.memory_space<vmem>>, %arg3: memref<32x128xbf16, #tpu.memory_space<vmem>>, %arg4: memref<32x1xi32, #tpu.memory_space<vmem>>, %arg5: memref<1x32xi32, #tpu.memory_space<vmem>>, %arg6: memref<32x1xf32, #tpu.memory_space<vmem>>, %arg7: memref<32x1xf32, #tpu.memory_space<vmem>>, %arg8: memref<32x1xf32, #tpu.memory_space<vmem>>, %arg9: memref<32x1xf32, #tpu.memory_space<vmem>>, %arg10: memref<32x1xf32, #tpu.memory_space<vmem>>) attributes {dimension_semantics = [#tpu.dimension_semantics<parallel>, #tpu.dimension_semantics<arbitrary>], iteration_bounds = array<i64: 1, 1>, scalar_prefetch = 0 : i64, scratch_operands = 4 : i64, tpu.core_type = #tpu.core_type<tc>, window_params = [{transform_indices = @transform_0, window_bounds = array<i64: 32, 128>}, {transform_indices = @transform_1, window_bounds = array<i64: 32, 128>}, {transform_indices = @transform_2, window_bounds = array<i64: 32, 1>}, {transform_indices = @transform_3, window_bounds = array<i64: 1, 32>}, {transform_indices = @transform_4, window_bounds = array<i64: 32, 1>}]} {
    %c0_i32 = arith.constant 0 : i32
    %0 = arith.cmpi eq, %arg1, %c0_i32 : i32
    %1 = arith.extui %0 : i1 to i32
    %c0_i32_0 = arith.constant 0 : i32
    %2 = arith.cmpi ne, %1, %c0_i32_0 : i32
    scf.if %2 {
      %cst_36 = arith.constant 0xFF800000 : f32
      %59 = vector.broadcast %cst_36 : f32 to vector<32x1xf32>
      %c0_37 = arith.constant 0 : index
      %c0_38 = arith.constant 0 : index
      %60 = vector.load %arg7[%c0_37, %c0_38] : memref<32x1xf32, #tpu.memory_space<vmem>>, vector<32x1xf32>
      tpu.vector_store %arg7[%c0_37, %c0_38], %59 {strides = array<i32>} : memref<32x1xf32, #tpu.memory_space<vmem>>, vector<32x1xf32>,
      %cst_39 = arith.constant 0.000000e+00 : f32
      %61 = vector.broadcast %cst_39 : f32 to vector<32x1xf32>
      %c0_40 = arith.constant 0 : index
      %c0_41 = arith.constant 0 : index
      %62 = vector.load %arg8[%c0_40, %c0_41] : memref<32x1xf32, #tpu.memory_space<vmem>>, vector<32x1xf32>
      tpu.vector_store %arg8[%c0_40, %c0_41], %61 {strides = array<i32>} : memref<32x1xf32, #tpu.memory_space<vmem>>, vector<32x1xf32>,
      %cst_42 = arith.constant 0.000000e+00 : f32
      %63 = vector.broadcast %cst_42 : f32 to vector<32x1xf32>
      %c0_43 = arith.constant 0 : index
      %c0_44 = arith.constant 0 : index
      %64 = vector.load %arg9[%c0_43, %c0_44] : memref<32x1xf32, #tpu.memory_space<vmem>>, vector<32x1xf32>
      tpu.vector_store %arg9[%c0_43, %c0_44], %63 {strides = array<i32>} : memref<32x1xf32, #tpu.memory_space<vmem>>, vector<32x1xf32>,
      %cst_45 = arith.constant 0.000000e+00 : f32
      %65 = vector.broadcast %cst_45 : f32 to vector<32x1xf32>
      %c0_46 = arith.constant 0 : index
      %c0_47 = arith.constant 0 : index
      %66 = vector.load %arg10[%c0_46, %c0_47] : memref<32x1xf32, #tpu.memory_space<vmem>>, vector<32x1xf32>
      tpu.vector_store %arg10[%c0_46, %c0_47], %65 {strides = array<i32>} : memref<32x1xf32, #tpu.memory_space<vmem>>, vector<32x1xf32>,
    } else {
    }
    %c0 = arith.constant 0 : index
    %c0_1 = arith.constant 0 : index
    %3 = vector.load %arg2[%c0, %c0_1] : memref<32x128xbf16, #tpu.memory_space<vmem>>, vector<32x128xbf16>
    %cst = arith.constant 1.431250e+01 : bf16
    %4 = vector.broadcast %cst : bf16 to vector<32x128xbf16>
    %5 = arith.mulf %3, %4 : vector<32x128xbf16>
    %c0_2 = arith.constant 0 : index
    %c0_3 = arith.constant 0 : index
    %6 = vector.load %arg3[%c0_2, %c0_3] : memref<32x128xbf16, #tpu.memory_space<vmem>>, vector<32x128xbf16>
    %cst_4 = arith.constant dense<0.000000e+00> : vector<32x32xf32>
    %7 = tpu.matmul %5, %6, %cst_4 {dimension_numbers = #tpu.dot_dimension_numbers<[1], [1], [0], [0], [0, 0, 1, 0], [], []>} : vector<32x128xbf16>, vector<32x128xbf16>, vector<32x32xf32> -> vector<32x32xf32>
    %c0_5 = arith.constant 0 : index
    %c0_6 = arith.constant 0 : index
    %8 = vector.load %arg4[%c0_5, %c0_6] : memref<32x1xi32, #tpu.memory_space<vmem>>, vector<32x1xi32>
    %c0_7 = arith.constant 0 : index
    %c0_8 = arith.constant 0 : index
    %9 = vector.load %arg5[%c0_7, %c0_8] : memref<1x32xi32, #tpu.memory_space<vmem>>, vector<1x32xi32>
    %10 = vector.broadcast %8 : vector<32x1xi32> to vector<32x32xi32>
    %11 = vector.broadcast %9 : vector<1x32xi32> to vector<32x32xi32>
    %12 = arith.cmpi eq, %10, %11 : vector<32x32xi32>
    %c32_i32 = arith.constant 32 : i32
    %13 = arith.muli %arg0, %c32_i32 : i32
    %14 = tpu.iota {dimensions = array<i32: 0>} : vector<32x32xi32>
    %15 = vector.broadcast %13 : i32 to vector<32x32xi32>
    %16 = arith.addi %15, %14 : vector<32x32xi32>
    %c32_i32_9 = arith.constant 32 : i32
    %17 = arith.muli %arg1, %c32_i32_9 : i32
    %18 = tpu.iota {dimensions = array<i32: 1>} : vector<32x32xi32>
    %19 = vector.broadcast %17 : i32 to vector<32x32xi32>
    %20 = arith.addi %19, %18 : vector<32x32xi32>
    %21 = arith.cmpi ne, %16, %20 : vector<32x32xi32>
    %22 = arith.andi %12, %21 : vector<32x32xi1>
    %c0_10 = arith.constant 0 : index
    %c0_11 = arith.constant 0 : index
    %23 = vector.load %arg7[%c0_10, %c0_11] : memref<32x1xf32, #tpu.memory_space<vmem>>, vector<32x1xf32>
    %cst_12 = arith.constant dense<0xFF800000> : vector<32xf32>
    %24 = vector.multi_reduction <maximumf>, %7, %cst_12 [1] : vector<32x32xf32> to vector<32xf32>
    %25 = vector.shape_cast %24 : vector<32xf32> to vector<32x1xf32>
    %26 = arith.maximumf %23, %25 : vector<32x1xf32>
    %27 = vector.broadcast %26 : vector<32x1xf32> to vector<32x32xf32>
    %28 = arith.subf %7, %27 : vector<32x32xf32>
    %29 = math.exp %28 : vector<32x32xf32>
    %cst_13 = arith.constant 0.000000e+00 : f32
    %30 = vector.broadcast %cst_13 : f32 to vector<32x32xf32>
    %31 = arith.select %22, %29, %30 : vector<32x32xi1>, vector<32x32xf32>
    %c0_14 = arith.constant 0 : index
    %c0_15 = arith.constant 0 : index
    %32 = vector.load %arg8[%c0_14, %c0_15] : memref<32x1xf32, #tpu.memory_space<vmem>>, vector<32x1xf32>
    %33 = arith.subf %23, %26 : vector<32x1xf32>
    %34 = math.exp %33 : vector<32x1xf32>
    %35 = arith.mulf %32, %34 : vector<32x1xf32>
    %cst_16 = arith.constant dense<0.000000e+00> : vector<32xf32>
    %36 = vector.multi_reduction <add>, %31, %cst_16 [1] : vector<32x32xf32> to vector<32xf32>
    %37 = vector.shape_cast %36 : vector<32xf32> to vector<32x1xf32>
    %38 = arith.addf %35, %37 : vector<32x1xf32>
    %c0_17 = arith.constant 0 : index
    %c0_18 = arith.constant 0 : index
    %39 = vector.load %arg8[%c0_17, %c0_18] : memref<32x1xf32, #tpu.memory_space<vmem>>, vector<32x1xf32>
    tpu.vector_store %arg8[%c0_17, %c0_18], %38 {strides = array<i32>} : memref<32x1xf32, #tpu.memory_space<vmem>>, vector<32x1xf32>,
    %c0_19 = arith.constant 0 : index
    %c0_20 = arith.constant 0 : index
    %40 = vector.load %arg9[%c0_19, %c0_20] : memref<32x1xf32, #tpu.memory_space<vmem>>, vector<32x1xf32>
    %cst_21 = arith.constant 0.000000e+00 : f32
    %41 = vector.broadcast %cst_21 : f32 to vector<32x32xf32>
    %42 = arith.select %22, %7, %41 : vector<32x32xi1>, vector<32x32xf32>
    %cst_22 = arith.constant dense<0.000000e+00> : vector<32xf32>
    %43 = vector.multi_reduction <add>, %42, %cst_22 [1] : vector<32x32xf32> to vector<32xf32>
    %44 = vector.shape_cast %43 : vector<32xf32> to vector<32x1xf32>
    %45 = arith.addf %40, %44 : vector<32x1xf32>
    %c0_23 = arith.constant 0 : index
    %c0_24 = arith.constant 0 : index
    %46 = vector.load %arg9[%c0_23, %c0_24] : memref<32x1xf32, #tpu.memory_space<vmem>>, vector<32x1xf32>
    tpu.vector_store %arg9[%c0_23, %c0_24], %45 {strides = array<i32>} : memref<32x1xf32, #tpu.memory_space<vmem>>, vector<32x1xf32>,
    %c0_25 = arith.constant 0 : index
    %c0_26 = arith.constant 0 : index
    %47 = vector.load %arg10[%c0_25, %c0_26] : memref<32x1xf32, #tpu.memory_space<vmem>>, vector<32x1xf32>
    %cst_27 = arith.constant 1.000000e+00 : f32
    %cst_28 = arith.constant 0.000000e+00 : f32
    %48 = vector.broadcast %cst_27 : f32 to vector<32x32xf32>
    %49 = vector.broadcast %cst_28 : f32 to vector<32x32xf32>
    %50 = arith.select %22, %48, %49 : vector<32x32xi1>, vector<32x32xf32>
    %cst_29 = arith.constant dense<0.000000e+00> : vector<32xf32>
    %51 = vector.multi_reduction <add>, %50, %cst_29 [1] : vector<32x32xf32> to vector<32xf32>
    %52 = vector.shape_cast %51 : vector<32xf32> to vector<32x1xf32>
    %53 = arith.addf %47, %52 : vector<32x1xf32>
    %c0_30 = arith.constant 0 : index
    %c0_31 = arith.constant 0 : index
    %54 = vector.load %arg10[%c0_30, %c0_31] : memref<32x1xf32, #tpu.memory_space<vmem>>, vector<32x1xf32>
    tpu.vector_store %arg10[%c0_30, %c0_31], %53 {strides = array<i32>} : memref<32x1xf32, #tpu.memory_space<vmem>>, vector<32x1xf32>,
    %c0_32 = arith.constant 0 : index
    %c0_33 = arith.constant 0 : index
    %55 = vector.load %arg7[%c0_32, %c0_33] : memref<32x1xf32, #tpu.memory_space<vmem>>, vector<32x1xf32>
    tpu.vector_store %arg7[%c0_32, %c0_33], %26 {strides = array<i32>} : memref<32x1xf32, #tpu.memory_space<vmem>>, vector<32x1xf32>,
    %c0_i32_34 = arith.constant 0 : i32
    %56 = arith.cmpi eq, %arg1, %c0_i32_34 : i32
    %57 = arith.extui %56 : i1 to i32
    %c0_i32_35 = arith.constant 0 : i32
    %58 = arith.cmpi ne, %57, %c0_i32_35 : i32
    scf.if %58 {
      %c0_36 = arith.constant 0 : index
      %c0_37 = arith.constant 0 : index
      %59 = vector.load %arg10[%c0_36, %c0_37] : memref<32x1xf32, #tpu.memory_space<vmem>>, vector<32x1xf32>
      %c0_38 = arith.constant 0 : index
      %c0_39 = arith.constant 0 : index
      %60 = vector.load %arg7[%c0_38, %c0_39] : memref<32x1xf32, #tpu.memory_space<vmem>>, vector<32x1xf32>
      %c0_40 = arith.constant 0 : index
      %c0_41 = arith.constant 0 : index
      %61 = vector.load %arg8[%c0_40, %c0_41] : memref<32x1xf32, #tpu.memory_space<vmem>>, vector<32x1xf32>
      %62 = math.log %61 : vector<32x1xf32>
      %63 = arith.addf %60, %62 : vector<32x1xf32>
      %cst_42 = arith.constant 0.000000e+00 : f32
      %64 = vector.broadcast %cst_42 : f32 to vector<32x1xf32>
      %65 = arith.cmpf ogt, %59, %64 : vector<32x1xf32>
      %c0_43 = arith.constant 0 : index
      %c0_44 = arith.constant 0 : index
      %66 = vector.load %arg9[%c0_43, %c0_44] : memref<32x1xf32, #tpu.memory_space<vmem>>, vector<32x1xf32>
      %67 = arith.mulf %59, %63 : vector<32x1xf32>
      %68 = arith.subf %66, %67 : vector<32x1xf32>
      %cst_45 = arith.constant 0.000000e+00 : f32
      %69 = vector.broadcast %cst_45 : f32 to vector<32x1xf32>
      %70 = arith.select %65, %68, %69 : vector<32x1xi1>, vector<32x1xf32>
      %c0_46 = arith.constant 0 : index
      %c0_47 = arith.constant 0 : index
      %71 = vector.load %arg6[%c0_46, %c0_47] : memref<32x1xf32, #tpu.memory_space<vmem>>, vector<32x1xf32>
      tpu.vector_store %arg6[%c0_46, %c0_47], %70 {strides = array<i32>} : memref<32x1xf32, #tpu.memory_space<vmem>>, vector<32x1xf32>,
    } else {
    }
    return
  }
  func.func @transform_0(%arg0: i32, %arg1: i32) -> (i32, i32) {
    %c0_i32 = arith.constant 0 : i32
    %c0_i32_0 = arith.constant 0 : i32
    return %arg0, %c0_i32 : i32, i32
  }
  func.func @transform_1(%arg0: i32, %arg1: i32) -> (i32, i32) {
    %c0_i32 = arith.constant 0 : i32
    %c0_i32_0 = arith.constant 0 : i32
    return %arg1, %c0_i32 : i32, i32
  }
  func.func @transform_2(%arg0: i32, %arg1: i32) -> (i32, i32) {
    %c0_i32 = arith.constant 0 : i32
    %c0_i32_0 = arith.constant 0 : i32
    return %arg0, %c0_i32 : i32, i32
  }
  func.func @transform_3(%arg0: i32, %arg1: i32) -> (i32, i32) {
    %c0_i32 = arith.constant 0 : i32
    %c0_i32_0 = arith.constant 0 : i32
    return %c0_i32, %arg1 : i32, i32
  }
  func.func @transform_4(%arg0: i32, %arg1: i32) -> (i32, i32) {
    %c0_i32 = arith.constant 0 : i32
    %c0_i32_0 = arith.constant 0 : i32
    return %arg0, %c0_i32 : i32, i32
  }
}

</mosaic_0001>

<llo_original>
// kernel: tpu_custom_call.1
$region0: #{tpu_custom_call.1}
  #allocation0 [shape = 'u32[]', space=smem, size = 0x4, offset = 0x4, fixed_abs, tag = 'smem constant byte address 0x4 - core index']
  #allocation1 [shape = 'u32[144,128]{1,0:T(1,128)}', space=vmem, size = 0x12000, scoped, tag = 'internal scratch']
  #allocation2 [shape = 'f32[32,1]{1,0:T(8,128)}', space=vmem, size = 0x4000, scoped, tag = 'scratch operand']
  #allocation3 [shape = 'f32[32,1]{1,0:T(8,128)}', space=vmem, size = 0x4000, scoped, tag = 'scratch operand']
  #allocation4 [shape = 'f32[32,1]{1,0:T(8,128)}', space=vmem, size = 0x4000, scoped, tag = 'scratch operand']
  #allocation5 [shape = 'f32[32,1]{1,0:T(8,128)}', space=vmem, size = 0x4000, scoped, tag = 'scratch operand']
  %s0 = inlined_call_operand.vmem [shape: bf16[32,128], index: 0, kind: input, shape index: {}]
  %s1 = inlined_call_operand.vmem [shape: bf16[32,128], index: 1, kind: input, shape index: {}]
  %s2 = inlined_call_operand.vmem [shape: s32[32,1], index: 2, kind: input, shape index: {}]
  %s3 = inlined_call_operand.vmem [shape: s32[1,32], index: 3, kind: input, shape index: {}]
  %s4 = inlined_call_operand.vmem [shape: f32[32,1], index: 4, kind: output, shape index: {}]
  %s5 = sld [smem:[#allocation0]]
  $region34: #{tpu_custom_call.1} parent=0
    _
  %s7 = ssub.s32 1, %s5
  %s8 = scalar_select 0, %s7, %s5
  // Predicated region
  $region2: #{tpu_custom_call.1} parent=0 // pred_check
    _
  $region3: #{tpu_custom_call.1} parent=0 // pred_check_branch
    %10 = sbr.rel (0) target = $region5
  $region4: #{tpu_custom_call.1} parent=0 // pred_region
    _
  $region5: #{tpu_custom_call.1} parent=0 // pred_fallthru
    _
  // Predicated region
  $region6: #{tpu_custom_call.1} parent=0 // pred_check
    _
  $region7: #{tpu_custom_call.1} parent=0 // pred_check_branch
    %12 = sbr.rel (0) target = $region9
  $region8: #{tpu_custom_call.1} parent=0 // pred_region
    _
  $region9: #{tpu_custom_call.1} parent=0 // pred_fallthru
    _
  // Predicated region
  $region10: #{tpu_custom_call.1} parent=0 // pred_check
    _
  $region11: #{tpu_custom_call.1} parent=0 // pred_check_branch
    %14 = sbr.rel (0) target = $region13
  $region12: #{tpu_custom_call.1} parent=0 // pred_region
    _
  $region13: #{tpu_custom_call.1} parent=0 // pred_fallthru
    _
  // Predicated region
  $region14: #{tpu_custom_call.1} parent=0 // pred_check
    _
  $region15: #{tpu_custom_call.1} parent=0 // pred_check_branch
    %16 = sbr.rel (0) target = $region17
  $region16: #{tpu_custom_call.1} parent=0 // pred_region
    _
  $region17: #{tpu_custom_call.1} parent=0 // pred_fallthru
    _
  %p19 = scmp.eq.s32.totalorder 0, 0
  // Predicated region
  $region18: #{tpu_custom_call.1} parent=0 // pred_check
    %p20 = pneg %p19
  $region19: #{tpu_custom_call.1} parent=0 // pred_check_branch
    %22 = sbr.rel (%p20) target = $region21
  $region20: #{tpu_custom_call.1} parent=0 // pred_region
    %vm23 = vcmask 7168
    %24 = vst.msk [vmem:[#allocation2] sm:$0xff] %vm23, -inf
    %25 = vst.msk [vmem:[#allocation2 + $0x8] sm:$0xff] %vm23, -inf
    %26 = vst.msk [vmem:[#allocation2 + $0x10] sm:$0xff] %vm23, -inf
    %27 = vst.msk [vmem:[#allocation2 + $0x18] sm:$0xff] %vm23, -inf
    %28 = vst.msk [vmem:[#allocation3] sm:$0xff] %vm23, 0.0
    %29 = vst.msk [vmem:[#allocation3 + $0x8] sm:$0xff] %vm23, 0.0
    %30 = vst.msk [vmem:[#allocation3 + $0x10] sm:$0xff] %vm23, 0.0
    %31 = vst.msk [vmem:[#allocation3 + $0x18] sm:$0xff] %vm23, 0.0
    %32 = vst.msk [vmem:[#allocation4] sm:$0xff] %vm23, 0.0
    %33 = vst.msk [vmem:[#allocation4 + $0x8] sm:$0xff] %vm23, 0.0
    %34 = vst.msk [vmem:[#allocation4 + $0x10] sm:$0xff] %vm23, 0.0
    %35 = vst.msk [vmem:[#allocation4 + $0x18] sm:$0xff] %vm23, 0.0
    %36 = vst.msk [vmem:[#allocation5] sm:$0xff] %vm23, 0.0
    %37 = vst.msk [vmem:[#allocation5 + $0x8] sm:$0xff] %vm23, 0.0
    %38 = vst.msk [vmem:[#allocation5 + $0x10] sm:$0xff] %vm23, 0.0
    %39 = vst.msk [vmem:[#allocation5 + $0x18] sm:$0xff] %vm23, 0.0
  $region21: #{tpu_custom_call.1} parent=0 // pred_fallthru
    _
  %v40 = vld [vmem:[%s0] sm:$0xf]
  %v41 = vld [vmem:[%s0 + $0x4] sm:$0xf]
  %v42 = vld [vmem:[%s0 + $0x8] sm:$0xf]
  %v43 = vld [vmem:[%s0 + $0xc] sm:$0xf]
  %v44 = vmul.bf16 %v40, 1097154917
  %v45 = vmul.bf16 %v41, 1097154917
  %v46 = vmul.bf16 %v42, 1097154917
  %v47 = vmul.bf16 %v43, 1097154917
  %v48 = vld [vmem:[%s1] sm:$0xf]
  %v49 = vld [vmem:[%s1 + $0x4] sm:$0xf]
  %v50 = vld [vmem:[%s1 + $0x8] sm:$0xf]
  %v51 = vld [vmem:[%s1 + $0xc] sm:$0xf]
  %v56 = vunpack.c.l.b16 %v44
  %v57 = vunpack.c.l.b16 %v45
  %v58 = vunpack.c.l.b16 %v46
  %v59 = vunpack.c.l.b16 %v47
  %v60 = vpack.c.b16 %v57, %v56
  %v61 = vpack.c.b16 %v59, %v58
  %v68 = vunpack.c.l.b16 %v48
  %v69 = vunpack.c.l.b16 %v49
  %v70 = vunpack.c.l.b16 %v50
  %v71 = vunpack.c.l.b16 %v51
  %v72 = vpack.c.b16 %v69, %v68
  %v73 = vpack.c.b16 %v71, %v70
  %76 = vmatprep.subr.bf16.mxu0 0
  %77 = vmatpush1.bf16.xpose.msra.mxu0 %v72
  %78 = vmatprep.subr.bf16.mxu0 0
  %79 = vmatpush1.bf16.xpose.msra.mxu0 %v73
  %80 = vmatprep.subr.bf16.mxu0 0
  %81 = vmatpush1.bf16.xpose.msra.mxu0 0
  %82 = vmatprep.subr.bf16.mxu0 0
  %83 = vmatpush1.bf16.xpose.msra.mxu0 0
  %84 = vmatprep.subr.bf16.mxu0 0
  %85 = vmatpush1.bf16.xpose.msra.mxu0 0
  %86 = vmatprep.subr.bf16.mxu0 0
  %87 = vmatpush1.bf16.xpose.msra.mxu0 0
  %88 = vmatprep.subr.bf16.mxu0 0
  %89 = vmatpush1.bf16.xpose.msra.mxu0 0
  %90 = vmatprep.subr.bf16.mxu0 0
  %91 = vmatpush1.bf16.xpose.msra.mxu0 0
  %92 = vmatprep.subr.bf16.mxu0 0
  %93 = vmatpush1.bf16.xpose.msra.mxu0 0
  %94 = vmatprep.subr.bf16.mxu0 0
  %95 = vmatpush1.bf16.xpose.msra.mxu0 0
  %96 = vmatprep.subr.bf16.mxu0 0
  %97 = vmatpush1.bf16.xpose.msra.mxu0 0
  %98 = vmatprep.subr.bf16.mxu0 0
  %99 = vmatpush1.bf16.xpose.msra.mxu0 0
  %100 = vmatprep.subr.bf16.mxu0 0
  %101 = vmatpush1.bf16.xpose.msra.mxu0 0
  %102 = vmatprep.subr.bf16.mxu0 0
  %103 = vmatpush1.bf16.xpose.msra.mxu0 0
  %104 = vmatprep.subr.bf16.mxu0 0
  %105 = vmatpush1.bf16.xpose.msra.mxu0 0
  %106 = vmatprep.subr.bf16.mxu0 0
  %107 = vmatpush1.bf16.xpose.msra.mxu0 0
  %108 = vmatprep.mubr.bf16.mxu0 0
  %109 = vmatmul.mubr.bf16.gmra.mrb[0].mxu0 %v60
  %v110 = vpop.f32.mrb[0].mxu0
  %v111 = vadd.f32 0.0, %v110
  %v112 = vpop.f32.mrb[0].mxu0
  %v113 = vpop.f32.mrb[0].mxu0
  %v114 = vadd.f32 0.0, %v113
  %v115 = vpop.f32.mrb[0].mxu0
  %116 = vmatprep.mubr.bf16.mxu0 0
  %117 = vmatmul.mubr.bf16.gmra.mrb[0].mxu0 %v61
  %v118 = vpop.f32.mrb[0].mxu0
  %v119 = vadd.f32 0.0, %v118
  %v120 = vpop.f32.mrb[0].mxu0
  %v121 = vpop.f32.mrb[0].mxu0
  %v122 = vadd.f32 0.0, %v121
  %v123 = vpop.f32.mrb[0].mxu0
  %124 = vdwg.mxu0
  %v125 = vld [vmem:[%s2] sm:$0xff]
  %v126 = vld [vmem:[%s2 + $0x8] sm:$0xff]
  %v127 = vld [vmem:[%s2 + $0x10] sm:$0xff]
  %v128 = vld [vmem:[%s2 + $0x18] sm:$0xff]
  %v129 = vld [vmem:[%s3] sm:$0x1]
  %130 = vset.pattern.permute.xlu0 0
  %131 = vperm.xlu0 %130, %v125
  %v132 = vpop.permute.xlu0 %131
  %133 = vset.pattern.permute.xlu0 0
  %134 = vperm.xlu0 %133, %v126
  %v135 = vpop.permute.xlu0 %134
  %136 = vset.pattern.permute.xlu0 0
  %137 = vperm.xlu0 %136, %v127
  %v138 = vpop.permute.xlu0 %137
  %139 = vset.pattern.permute.xlu0 0
  %140 = vperm.xlu0 %139, %v128
  %v141 = vpop.permute.xlu0 %140
  %v142 = vlaneseq
  %v143 = vshrl.u32 %v142, 7
  %v144 = vsub.s32 0, %v143
  %v145 = vrot.slane %v129, %v144
  %vm146 = vcmp.eq.s32.totalorder %v132, %v145
  %vm147 = vcmp.eq.s32.totalorder %v135, %v145
  %vm148 = vcmp.eq.s32.totalorder %v138, %v145
  %vm149 = vcmp.eq.s32.totalorder %v141, %v145
  %s150 = smul.u32 0, 32
  %v151 = vlaneseq
  %v152 = vshrl.u32 %v151, 7
  %v153 = vadd.s32 %v152, 8
  %v154 = vadd.s32 %v152, 16
  %v155 = vadd.s32 %v152, 24
  %v156 = vstv %s150
  %v157 = vadd.s32 %v156, %v152
  %v158 = vadd.s32 %v156, %v153
  %v159 = vadd.s32 %v156, %v154
  %v160 = vadd.s32 %v156, %v155
  %s161 = smul.u32 0, 32
  %v162 = vlaneseq
  %v163 = vand.u32 %v162, 127
  %v164 = vstv %s161
  %v165 = vadd.s32 %v164, %v163
  %vm166 = vcmp.ne.s32.totalorder %v157, %v165
  %vm167 = vcmp.ne.s32.totalorder %v158, %v165
  %vm168 = vcmp.ne.s32.totalorder %v159, %v165
  %vm169 = vcmp.ne.s32.totalorder %v160, %v165
  %vm170 = vmand %vm146, %vm166
  %vm171 = vmand %vm147, %vm167
  %vm172 = vmand %vm148, %vm168
  %vm173 = vmand %vm149, %vm169
  %v174 = vld [vmem:[#allocation2] sm:$0xff]
  %v175 = vld [vmem:[#allocation2 + $0x8] sm:$0xff]
  %v176 = vld [vmem:[#allocation2 + $0x10] sm:$0xff]
  %v177 = vld [vmem:[#allocation2 + $0x18] sm:$0xff]
  %vm178 = vcmask 261120
  %v179 = vsel %vm178, %v111, -inf
  %180 = vmax.xlane.f32.xlu0 %v179
  %v181 = vpop.xlane.xlu0 %180
  %v182 = vsel %vm178, %v114, -inf
  %183 = vmax.xlane.f32.xlu0 %v182
  %v184 = vpop.xlane.xlu0 %183
  %v185 = vsel %vm178, %v119, -inf
  %186 = vmax.xlane.f32.xlu0 %v185
  %v187 = vpop.xlane.xlu0 %186
  %v188 = vsel %vm178, %v122, -inf
  %189 = vmax.xlane.f32.xlu0 %v188
  %v190 = vpop.xlane.xlu0 %189
  %v191 = vmax.f32 %v174, %v181
  %v192 = vmax.f32 %v175, %v184
  %v193 = vmax.f32 %v176, %v187
  %v194 = vmax.f32 %v177, %v190
  %196 = vset.pattern.permute.xlu0 0
  %197 = vperm.xlu0 %196, %v191
  %v198 = vpop.permute.xlu0 %197
  %201 = vset.pattern.permute.xlu0 0
  %202 = vperm.xlu0 %201, %v192
  %v203 = vpop.permute.xlu0 %202
  %206 = vset.pattern.permute.xlu0 0
  %207 = vperm.xlu0 %206, %v193
  %v208 = vpop.permute.xlu0 %207
  %211 = vset.pattern.permute.xlu0 0
  %212 = vperm.xlu0 %211, %v194
  %v213 = vpop.permute.xlu0 %212
  %v215 = vsub.f32 %v111, %v198
  %v216 = vsub.f32 %v114, %v203
  %v217 = vsub.f32 %v119, %v208
  %v218 = vsub.f32 %v122, %v213
  %v219 = vmul.f32 %v215, 1.442695
  %v220 = vpow.pop %v219
  %v221 = vmul.f32 %v216, 1.442695
  %v222 = vpow.pop %v221
  %v223 = vmul.f32 %v217, 1.442695
  %v224 = vpow.pop %v223
  %v225 = vmul.f32 %v218, 1.442695
  %v226 = vpow.pop %v225
  %v227 = vsel %vm170, %v220, 0.0
  %v228 = vsel %vm171, %v222, 0.0
  %v229 = vsel %vm172, %v224, 0.0
  %v230 = vsel %vm173, %v226, 0.0
  %v231 = vld [vmem:[#allocation3] sm:$0xff]
  %v232 = vld [vmem:[#allocation3 + $0x8] sm:$0xff]
  %v233 = vld [vmem:[#allocation3 + $0x10] sm:$0xff]
  %v234 = vld [vmem:[#allocation3 + $0x18] sm:$0xff]
  %v235 = vsub.f32 %v174, %v191
  %v236 = vsub.f32 %v175, %v192
  %v237 = vsub.f32 %v176, %v193
  %v238 = vsub.f32 %v177, %v194
  %v239 = vmul.f32 %v235, 1.442695
  %v240 = vpow.pop %v239
  %v241 = vmul.f32 %v236, 1.442695
  %v242 = vpow.pop %v241
  %v243 = vmul.f32 %v237, 1.442695
  %v244 = vpow.pop %v243
  %v245 = vmul.f32 %v238, 1.442695
  %v246 = vpow.pop %v245
  %v247 = vmul.f32 %v231, %v240
  %v248 = vmul.f32 %v232, %v242
  %v249 = vmul.f32 %v233, %v244
  %v250 = vmul.f32 %v234, %v246
  %v251 = vsel %vm178, %v227, 0.0
  %252 = vadd.xlane.f32.xlu0 %v251
  %v253 = vpop.xlane.xlu0 %252
  %v254 = vsel %vm178, %v228, 0.0
  %255 = vadd.xlane.f32.xlu0 %v254
  %v256 = vpop.xlane.xlu0 %255
  %v257 = vsel %vm178, %v229, 0.0
  %258 = vadd.xlane.f32.xlu0 %v257
  %v259 = vpop.xlane.xlu0 %258
  %v260 = vsel %vm178, %v230, 0.0
  %261 = vadd.xlane.f32.xlu0 %v260
  %v262 = vpop.xlane.xlu0 %261
  %v263 = vadd.f32 %v247, %v253
  %v264 = vadd.f32 %v248, %v256
  %v265 = vadd.f32 %v249, %v259
  %v266 = vadd.f32 %v250, %v262
  %vm267 = vcmask 7168
  %268 = vst.msk [vmem:[#allocation3] sm:$0xff] %vm267, %v263
  %269 = vst.msk [vmem:[#allocation3 + $0x8] sm:$0xff] %vm267, %v264
  %270 = vst.msk [vmem:[#allocation3 + $0x10] sm:$0xff] %vm267, %v265
  %271 = vst.msk [vmem:[#allocation3 + $0x18] sm:$0xff] %vm267, %v266
  %v272 = vld [vmem:[#allocation4] sm:$0xff]
  %v273 = vld [vmem:[#allocation4 + $0x8] sm:$0xff]
  %v274 = vld [vmem:[#allocation4 + $0x10] sm:$0xff]
  %v275 = vld [vmem:[#allocation4 + $0x18] sm:$0xff]
  %v276 = vsel %vm170, %v111, 0.0
  %v277 = vsel %vm171, %v114, 0.0
  %v278 = vsel %vm172, %v119, 0.0
  %v279 = vsel %vm173, %v122, 0.0
  %v280 = vsel %vm178, %v276, 0.0
  %281 = vadd.xlane.f32.xlu0 %v280
  %v282 = vpop.xlane.xlu0 %281
  %v283 = vsel %vm178, %v277, 0.0
  %284 = vadd.xlane.f32.xlu0 %v283
  %v285 = vpop.xlane.xlu0 %284
  %v286 = vsel %vm178, %v278, 0.0
  %287 = vadd.xlane.f32.xlu0 %v286
  %v288 = vpop.xlane.xlu0 %287
  %v289 = vsel %vm178, %v279, 0.0
  %290 = vadd.xlane.f32.xlu0 %v289
  %v291 = vpop.xlane.xlu0 %290
  %v292 = vadd.f32 %v272, %v282
  %v293 = vadd.f32 %v273, %v285
  %v294 = vadd.f32 %v274, %v288
  %v295 = vadd.f32 %v275, %v291
  %296 = vst.msk [vmem:[#allocation4] sm:$0xff] %vm267, %v292
  %297 = vst.msk [vmem:[#allocation4 + $0x8] sm:$0xff] %vm267, %v293
  %298 = vst.msk [vmem:[#allocation4 + $0x10] sm:$0xff] %vm267, %v294
  %299 = vst.msk [vmem:[#allocation4 + $0x18] sm:$0xff] %vm267, %v295
  %v300 = vld [vmem:[#allocation5] sm:$0xff]
  %v301 = vld [vmem:[#allocation5 + $0x8] sm:$0xff]
  %v302 = vld [vmem:[#allocation5 + $0x10] sm:$0xff]
  %v303 = vld [vmem:[#allocation5 + $0x18] sm:$0xff]
  %v304 = vsel %vm170, 1.0, 0.0
  %v305 = vsel %vm171, 1.0, 0.0
  %v306 = vsel %vm172, 1.0, 0.0
  %v307 = vsel %vm173, 1.0, 0.0
  %v308 = vsel %vm178, %v304, 0.0
  %309 = vadd.xlane.f32.xlu0 %v308
  %v310 = vpop.xlane.xlu0 %309
  %v311 = vsel %vm178, %v305, 0.0
  %312 = vadd.xlane.f32.xlu0 %v311
  %v313 = vpop.xlane.xlu0 %312
  %v314 = vsel %vm178, %v306, 0.0
  %315 = vadd.xlane.f32.xlu0 %v314
  %v316 = vpop.xlane.xlu0 %315
  %v317 = vsel %vm178, %v307, 0.0
  %318 = vadd.xlane.f32.xlu0 %v317
  %v319 = vpop.xlane.xlu0 %318
  %v320 = vadd.f32 %v300, %v310
  %v321 = vadd.f32 %v301, %v313
  %v322 = vadd.f32 %v302, %v316
  %v323 = vadd.f32 %v303, %v319
  %324 = vst.msk [vmem:[#allocation5] sm:$0xff] %vm267, %v320
  %325 = vst.msk [vmem:[#allocation5 + $0x8] sm:$0xff] %vm267, %v321
  %326 = vst.msk [vmem:[#allocation5 + $0x10] sm:$0xff] %vm267, %v322
  %327 = vst.msk [vmem:[#allocation5 + $0x18] sm:$0xff] %vm267, %v323
  %328 = vst.msk [vmem:[#allocation2] sm:$0xff] %vm267, %v191
  %329 = vst.msk [vmem:[#allocation2 + $0x8] sm:$0xff] %vm267, %v192
  %330 = vst.msk [vmem:[#allocation2 + $0x10] sm:$0xff] %vm267, %v193
  %331 = vst.msk [vmem:[#allocation2 + $0x18] sm:$0xff] %vm267, %v194
  // Predicated region
  $region22: #{tpu_custom_call.1} parent=0 // pred_check
    %p332 = pneg %p19
  $region23: #{tpu_custom_call.1} parent=0 // pred_check_branch
    %334 = sbr.rel (%p332) target = $region25
  $region24: #{tpu_custom_call.1} parent=0 // pred_region
    %v335 = vld [vmem:[#allocation5] sm:$0xff]
    %v336 = vld [vmem:[#allocation5 + $0x8] sm:$0xff]
    %v337 = vld [vmem:[#allocation5 + $0x10] sm:$0xff]
    %v338 = vld [vmem:[#allocation5 + $0x18] sm:$0xff]
    %v339 = vld [vmem:[#allocation2] sm:$0xff]
    %v340 = vld [vmem:[#allocation2 + $0x8] sm:$0xff]
    %v341 = vld [vmem:[#allocation2 + $0x10] sm:$0xff]
    %v342 = vld [vmem:[#allocation2 + $0x18] sm:$0xff]
    %v343 = vld [vmem:[#allocation3] sm:$0xff]
    %v344 = vld [vmem:[#allocation3 + $0x8] sm:$0xff]
    %v345 = vld [vmem:[#allocation3 + $0x10] sm:$0xff]
    %v346 = vld [vmem:[#allocation3 + $0x18] sm:$0xff]
    %v347 = vlog2.pop %v343
    %v348 = vmul.f32 %v347, 0.6931472
    %v349 = vlog2.pop %v344
    %v350 = vmul.f32 %v349, 0.6931472
    %v351 = vlog2.pop %v345
    %v352 = vmul.f32 %v351, 0.6931472
    %v353 = vlog2.pop %v346
    %v354 = vmul.f32 %v353, 0.6931472
    %v355 = vadd.f32 %v339, %v348
    %v356 = vadd.f32 %v340, %v350
    %v357 = vadd.f32 %v341, %v352
    %v358 = vadd.f32 %v342, %v354
    %vm359 = vcmp.gt.f32.partialorder %v335, 0.0
    %vm360 = vcmp.gt.f32.partialorder %v336, 0.0
    %vm361 = vcmp.gt.f32.partialorder %v337, 0.0
    %vm362 = vcmp.gt.f32.partialorder %v338, 0.0
    %v363 = vld [vmem:[#allocation4] sm:$0xff]
    %v364 = vld [vmem:[#allocation4 + $0x8] sm:$0xff]
    %v365 = vld [vmem:[#allocation4 + $0x10] sm:$0xff]
    %v366 = vld [vmem:[#allocation4 + $0x18] sm:$0xff]
    %v367 = vmul.f32 %v335, %v355
    %v368 = vmul.f32 %v336, %v356
    %v369 = vmul.f32 %v337, %v357
    %v370 = vmul.f32 %v338, %v358
    %v371 = vsub.f32 %v363, %v367
    %v372 = vsub.f32 %v364, %v368
    %v373 = vsub.f32 %v365, %v369
    %v374 = vsub.f32 %v366, %v370
    %v375 = vsel %vm359, %v371, 0.0
    %v376 = vsel %vm360, %v372, 0.0
    %v377 = vsel %vm361, %v373, 0.0
    %v378 = vsel %vm362, %v374, 0.0
    %379 = vst.msk [vmem:[%s4] sm:$0xff] %vm267, %v375
    %380 = vst.msk [vmem:[%s4 + $0x8] sm:$0xff] %vm267, %v376
    %381 = vst.msk [vmem:[%s4 + $0x10] sm:$0xff] %vm267, %v377
    %382 = vst.msk [vmem:[%s4 + $0x18] sm:$0xff] %vm267, %v378
  $region25: #{tpu_custom_call.1} parent=0 // pred_fallthru
    _
  // Predicated region
  $region26: #{tpu_custom_call.1} parent=0 // pred_check
    _
  $region27: #{tpu_custom_call.1} parent=0 // pred_check_branch
    %384 = sbr.rel (0) target = $region29
  $region28: #{tpu_custom_call.1} parent=0 // pred_region
    _
  $region29: #{tpu_custom_call.1} parent=0 // pred_fallthru
    _
  // Predicated region
  $region30: #{tpu_custom_call.1} parent=0 // pred_check
    _
  $region31: #{tpu_custom_call.1} parent=0 // pred_check_branch
    %386 = sbr.rel (0) target = $region33
  $region32: #{tpu_custom_call.1} parent=0 // pred_region
    _
  $region33: #{tpu_custom_call.1} parent=0 // pred_fallthru
    _

</llo_original>
